<compile_context>
chip_gen: v6e
topology: v6e:2x2x1
jax: 0.10.0
libtpu: 0.0.40
codegen_flags: <defaults>
</compile_context>

<pallas_src>
import numpy as np
import jax
import jax.numpy as jnp
from jax.experimental import pallas as pl
from jax.experimental.pallas import tpu as pltpu


def _cdiv(a, b):
    return (a + b - 1) // b


def _round_up(x, m):
    return _cdiv(x, m) * m


def _num_tensorcores_per_chip():
    """Best-effort detection of TensorCores per chip (v7x/megacore = 2)."""
    try:
        kind = jax.devices()[0].device_kind.lower()
    except Exception:
        return 1
    if "v7" in kind or "v4" in kind or "v5p" in kind:
        return 2
    return 1


def _plan_tiling(out_h, out_w, grid_size, bsz, *,
                 max_tile_lanes=32768, vmem_budget_bytes=24 << 20):
    """Pick padded dims, HW lane tile, grid size and an explicit scoped-VMEM limit."""
    N = grid_size * grid_size
    HW = out_h * out_w
    M = 2 * bsz
    k_pad = _round_up(N, 8)
    # Skip the sublane round-up when 2*bsz < 8: a block dim equal to the full
    # array extent is legal, and this halves output writeback at bsz=2.
    m_rows = M if M < 8 else _round_up(M, 8)

    # VMEM-aware lane cap: A tile + out tile, double-buffered, f32.
    per_lane_bytes = 4 * 2 * (k_pad + m_rows)
    vmem_cap_lanes = max(128, (vmem_budget_bytes // per_lane_bytes) // 128 * 128)
    max_tile = max(128, min(max_tile_lanes, vmem_cap_lanes))

    n_tiles = _cdiv(HW, max_tile)
    # Multi-TensorCore chips (v7x): make sure the parallel HW axis has a multiple
    # of num_tc steps once HW is DMA-bound, so both cores get pixel tiles.
    n_tc = _num_tensorcores_per_chip()
    if n_tc > 1 and HW > 4096:
        n_tiles = _round_up(max(n_tiles, n_tc), n_tc)

    tile = _round_up(_cdiv(HW, n_tiles), 128)
    hw_pad = tile * n_tiles

    # Explicit scoped-VMEM limit sized from the real footprint, with headroom.
    footprint = 2 * 4 * tile * (k_pad + m_rows) + 4 * m_rows * k_pad
    vmem_limit = int(min(max(footprint + (8 << 20), 32 << 20), 48 << 20))

    return dict(N=N, HW=HW, M=M, k_pad=k_pad, m_rows=m_rows,
                tile=tile, n_tiles=n_tiles, hw_pad=hw_pad,
                vmem_limit=vmem_limit)


def _build_constant(out_h, out_w, grid_size, plan):
    """Deterministic setup matching TPSGridGen.__init__ (grid, L^-1, U), folded.

    Returns A_pad of shape (k_pad, hw_pad): zero-padded Li[:, :N].T @ basis.T (f32).
    """
    N = grid_size * grid_size
    HW = out_h * out_w

    gx, gy = np.meshgrid(np.linspace(-1, 1, out_w), np.linspace(-1, 1, out_h))
    axis_coords = np.linspace(-1, 1, grid_size)
    PX, PY = np.meshgrid(axis_coords, axis_coords)
    PX = PX.reshape(-1)
    PY = PY.reshape(-1)

    # compute_L_inverse (f64 setup; cast at the end)
    D = (PX[:, None] - PX[None, :]) ** 2 + (PY[:, None] - PY[None, :]) ** 2
    D[D == 0] = 1.0
    K = D * np.log(D)
    P = np.concatenate([np.ones((N, 1)), PX[:, None], PY[:, None]], axis=1)
    L = np.zeros((N + 3, N + 3))
    L[:N, :N] = K
    L[:N, N:] = P
    L[N:, :N] = P.T
    # TODO(synk): matrix inverse (torch.inverse) has no Pallas primitive; done once at setup.
    Li = np.linalg.inv(L)                                   # (N+3, N+3)
    LiT = Li[:, :N].T                                       # (N, N+3)

    # compute_U, flattened over pixels (row-major, p = i*W + j)
    gxf = gx.reshape(-1)
    gyf = gy.reshape(-1)
    dist = (gxf[:, None] - PX[None, :]) ** 2 + (gyf[:, None] - PY[None, :]) ** 2
    dist[dist == 0] = 1.0
    U = dist * np.log(dist)                                 # (H*W, N)

    # Pixel basis row: fx = sum_n Wx[n]*U[n] + Ax0*1 + Ax1*gx + Ax2*gy
    B = np.concatenate([U, np.ones((HW, 1)), gxf[:, None], gyf[:, None]], axis=1)
    A = (LiT @ B.T).astype(np.float32)                      # (N, H*W)

    A_pad = np.zeros((plan["k_pad"], plan["hw_pad"]), np.float32)
    A_pad[:N, :HW] = A
    return A_pad


def tps_kernel(theta_ref, a_ref, out_ref):
    # theta_ref: (m_rows, k_pad)   a_ref: (k_pad, tile)   out_ref: (m_rows, tile)
    out_ref[...] = jnp.dot(
        theta_ref[...], a_ref[...], preferred_element_type=jnp.float32
    )


def tps_grid_gen(theta, a_pad, out_h, out_w, plan):
    """Equivalent of TPSGridGen.forward(theta); theta: (B, 2N) float32 -> (B, H, W, 2)."""
    bsz = theta.shape[0]
    N, HW, M = plan["N"], plan["HW"], plan["M"]
    k_pad, m_rows = plan["k_pad"], plan["m_rows"]
    tile, n_tiles, hw_pad = plan["tile"], plan["n_tiles"], plan["hw_pad"]

    # Fold batch: (B, 2N) -> (2B, N); pad K to the constant's padded K (and rows
    # to a sublane multiple only when 2B >= 8).
    q = theta.reshape(M, N).astype(jnp.float32)
    q = jnp.pad(q, ((0, m_rows - M), (0, k_pad - N)))

    out = pl.pallas_call(
        tps_kernel,
        out_shape=jax.ShapeDtypeStruct((m_rows, hw_pad), jnp.float32),
        grid_spec=pltpu.PrefetchScalarGridSpec(
            num_scalar_prefetch=0,
            grid=(n_tiles,),
            in_specs=[
                pl.BlockSpec((m_rows, k_pad), lambda h: (0, 0)),
                pl.BlockSpec((k_pad, tile), lambda h: (0, h)),
            ],
            out_specs=pl.BlockSpec((m_rows, tile), lambda h: (0, h)),
        ),
        compiler_params=pltpu.CompilerParams(
            dimension_semantics=("parallel",),
            vmem_limit_bytes=plan["vmem_limit"],
        ),
    )(q, a_pad)

    # (m_rows, hw_pad) -> strip padding -> (B, 2, HW) -> (B, H, W, 2)
    out = out[:M, :HW].reshape(bsz, 2, HW)
    return jnp.transpose(out, (0, 2, 1)).reshape(bsz, out_h, out_w, 2)


def _tps_reference_numpy(theta_np, out_h, out_w, grid_size):
    """Independent (un-folded) numpy replica of TPSGridGen.forward."""
    N = grid_size * grid_size
    gx, gy = np.meshgrid(np.linspace(-1, 1, out_w), np.linspace(-1, 1, out_h))
    axis_coords = np.linspace(-1, 1, grid_size)
    PX, PY = np.meshgrid(axis_coords, axis_coords)
    PX = PX.reshape(-1)
    PY = PY.reshape(-1)
    D = (PX[:, None] - PX[None, :]) ** 2 + (PY[:, None] - PY[None, :]) ** 2
    D[D == 0] = 1.0
    K = D * np.log(D)
    P = np.concatenate([np.ones((N, 1)), PX[:, None], PY[:, None]], axis=1)
    L = np.zeros((N + 3, N + 3))
    L[:N, :N] = K
    L[:N, N:] = P
    L[N:, :N] = P.T
    Li = np.linalg.inv(L)
    dist = (gx[..., None] - PX) ** 2 + (gy[..., None] - PY) ** 2
    dist[dist == 0] = 1.0
    U = dist * np.log(dist)                                  # (H, W, N)
    bsz = theta_np.shape[0]
    out = np.zeros((bsz, out_h, out_w, 2), np.float64)
    for b in range(bsz):
        Qx = theta_np[b, :N]
        Qy = theta_np[b, N:]
        Wx = Li[:N, :N] @ Qx
        Ax = Li[N:, :N] @ Qx
        Wy = Li[:N, :N] @ Qy
        Ay = Li[N:, :N] @ Qy
        out[b, ..., 0] = Ax[0] + Ax[1] * gx + Ax[2] * gy + U @ Wx
        out[b, ..., 1] = Ay[0] + Ay[1] * gx + Ay[2] * gy + U @ Wy
    return out.astype(np.float32)


if __name__ == "__main__":
    # Small shapes consistent with the module (module default is 28x28, grid_size=3).
    out_h, out_w, grid_size = 16, 16, 3
    N = grid_size * grid_size
    bsz = 2

    plan = _plan_tiling(out_h, out_w, grid_size, bsz)
    a_pad = jnp.asarray(_build_constant(out_h, out_w, grid_size, plan))

    key = jax.random.PRNGKey(0)
    theta = 0.1 * jax.random.normal(key, (bsz, 2 * N), dtype=jnp.float32)

    warped = tps_grid_gen(theta, a_pad, out_h, out_w, plan)
    warped = jax.block_until_ready(warped)

    ref = _tps_reference_numpy(np.asarray(theta), out_h, out_w, grid_size)
    assert warped.shape == (bsz, out_h, out_w, 2)
    assert np.allclose(np.asarray(warped), ref, atol=1e-4, rtol=1e-4)

    print("KERNEL_OK")
</pallas_src>

<mosaic_0001>
module attributes {stable_mosaic.version = 11 : i64} {
  func.func @tps_kernel(%arg0: i32, %arg1: memref<4x16xf32, #tpu.memory_space<vmem>>, %arg2: memref<16x256xf32, #tpu.memory_space<vmem>>, %arg3: memref<4x256xf32, #tpu.memory_space<vmem>>) attributes {dimension_semantics = [#tpu.dimension_semantics<parallel>], iteration_bounds = array<i64: 1>, scalar_prefetch = 0 : i64, scratch_operands = 0 : i64, tpu.core_type = #tpu.core_type<tc>, window_params = [{pipeline_mode = #tpu.pipeline_mode<synchronous>, transform_indices = @transform_0, window_bounds = array<i64: 4, 16>}, {transform_indices = @transform_1, window_bounds = array<i64: 16, 256>}, {transform_indices = @transform_2, window_bounds = array<i64: 4, 256>}]} {
    %c0 = arith.constant 0 : index
    %c0_0 = arith.constant 0 : index
    %0 = vector.load %arg1[%c0, %c0_0] : memref<4x16xf32, #tpu.memory_space<vmem>>, vector<4x16xf32>
    %c0_1 = arith.constant 0 : index
    %c0_2 = arith.constant 0 : index
    %1 = vector.load %arg2[%c0_1, %c0_2] : memref<16x256xf32, #tpu.memory_space<vmem>>, vector<16x256xf32>
    %cst = arith.constant dense<0.000000e+00> : vector<4x256xf32>
    %2 = tpu.matmul %0, %1, %cst {dimension_numbers = #tpu.dot_dimension_numbers<[1], [0], [0], [1], [0, 0, 1, 1], [], []>} : vector<4x16xf32>, vector<16x256xf32>, vector<4x256xf32> -> vector<4x256xf32>
    %c0_3 = arith.constant 0 : index
    %c0_4 = arith.constant 0 : index
    %3 = vector.load %arg3[%c0_3, %c0_4] : memref<4x256xf32, #tpu.memory_space<vmem>>, vector<4x256xf32>
    tpu.vector_store %arg3[%c0_3, %c0_4], %2 {strides = array<i32>} : memref<4x256xf32, #tpu.memory_space<vmem>>, vector<4x256xf32>,
    return
  }
  func.func @transform_0(%arg0: i32) -> (i32, i32) {
    %c0_i32 = arith.constant 0 : i32
    %c0_i32_0 = arith.constant 0 : i32
    %c0_i32_1 = arith.constant 0 : i32
    return %c0_i32, %c0_i32_0 : i32, i32
  }
  func.func @transform_1(%arg0: i32) -> (i32, i32) {
    %c0_i32 = arith.constant 0 : i32
    %c0_i32_0 = arith.constant 0 : i32
    return %c0_i32, %arg0 : i32, i32
  }
  func.func @transform_2(%arg0: i32) -> (i32, i32) {
    %c0_i32 = arith.constant 0 : i32
    %c0_i32_0 = arith.constant 0 : i32
    return %c0_i32, %arg0 : i32, i32
  }
}

</mosaic_0001>

<llo_original>
// kernel: tpu_custom_call.1
$region0: #{tpu_custom_call.1}
  #allocation0 [shape = 'u32[]', space=smem, size = 0x4, offset = 0x4, fixed_abs, tag = 'smem constant byte address 0x4 - core index']
  #allocation1 [shape = 'u32[144,128]{1,0:T(1,128)}', space=vmem, size = 0x12000, scoped, tag = 'internal scratch']
  %s0 = inlined_call_operand.hbm [shape: f32[4,16], index: 0, kind: input, shape index: {}]
  %s1 = inlined_call_operand.hbm [shape: f32[16,256], index: 1, kind: input, shape index: {}]
  %s2 = inlined_call_operand.hbm [shape: f32[4,256], index: 2, kind: output, shape index: {}]
  %s3 = sld [smem:[#allocation0]]
  $region26: #{tpu_custom_call.1} parent=0
    _
  %s5 = ssub.s32 1, %s3
  %s6 = scalar_select 0, %s5, %s3
  $region1: #{tpu_custom_call.1} parent=0
    #allocation2 [shape = 'u8[2048]{0}', space=vmem, size = 0x800, scoped, tag = 'input window, operand 0, single buffered']
    #allocation3 [shape = 's32[1]{0}', space=sflag, size = 0x4, scoped, tag = 'scoped memory for tpu_custom_call.1']
    #allocation4 [shape = 's32[1]{0}', space=sflag, size = 0x4, scoped, tag = 'scoped memory for tpu_custom_call.1']
    #allocation5 [shape = 'u8[16384]{0}', space=vmem, size = 0x4000, scoped, tag = 'input window, operand 1, single buffered']
    #allocation6 [shape = 's32[1]{0}', space=sflag, size = 0x4, scoped, tag = 'scoped memory for tpu_custom_call.1']
    #allocation7 [shape = 'u8[4096]{0}', space=vmem, size = 0x1000, scoped, tag = 'output window, operand 0, single buffered']
    %7 = vsyncpa [#allocation3], 0
    %8 = vsyncpa [#allocation6], 0
    %9 = vsyncpa [#allocation4], 0
    // Predicated region
    $region2: #{tpu_custom_call.1} parent=1 // pred_check
      _
    $region3: #{tpu_custom_call.1} parent=1 // pred_check_branch
      %11 = sbr.rel (0) target = $region5
    $region4: #{tpu_custom_call.1} parent=1 // pred_region
      %s13 = ssub.s32 64, 64
      %14 = vsyncadd [#allocation3], %s13
      %s16 = sshll.u32 [#allocation2], 4
      %s17 = int_to_ptr.vmem [resolvable:$true] %s16
      %19 = dma.hbm_to_vmem [thread:$0]  %s0, 64, %s17, [#allocation3]
    $region5: #{tpu_custom_call.1} parent=1 // pred_fallthru
      _
    // Predicated region
    $region6: #{tpu_custom_call.1} parent=1 // pred_check
      _
    $region7: #{tpu_custom_call.1} parent=1 // pred_check_branch
      %21 = sbr.rel (0) target = $region9
    $region8: #{tpu_custom_call.1} parent=1 // pred_region
      %s23 = ssub.s32 512, 512
      %24 = vsyncadd [#allocation6], %s23
      %s25 = sshll.u32 [#allocation5], 4
      %s26 = int_to_ptr.vmem [resolvable:$true] %s25
      %31 = dma.hbm_to_vmem [thread:$0]  %s1, 512, %s26, [#allocation6], 256, 256, 16
    $region9: #{tpu_custom_call.1} parent=1 // pred_fallthru
      _
    // Predicated region
    $region10: #{tpu_custom_call.1} parent=1 // pred_check
      _
    $region11: #{tpu_custom_call.1} parent=1 // pred_check_branch
      %33 = sbr.rel (0) target = $region13
    $region12: #{tpu_custom_call.1} parent=1 // pred_region
      %34 = dma.done [#allocation3], 64
    $region13: #{tpu_custom_call.1} parent=1 // pred_fallthru
      _
    // Predicated region
    $region14: #{tpu_custom_call.1} parent=1 // pred_check
      _
    $region15: #{tpu_custom_call.1} parent=1 // pred_check_branch
      %36 = sbr.rel (0) target = $region17
    $region16: #{tpu_custom_call.1} parent=1 // pred_region
      %37 = dma.done [#allocation6], 512
    $region17: #{tpu_custom_call.1} parent=1 // pred_fallthru
      _
    %v38 = vld [vmem:[#allocation2] sm:$0xf]
    %v39 = vld [vmem:[#allocation5] sm:$0xff]
    %v40 = vld [vmem:[#allocation5 + $0x8] sm:$0xff]
    %v41 = vld [vmem:[#allocation5 + $0x10] sm:$0xff]
    %v42 = vld [vmem:[#allocation5 + $0x18] sm:$0xff]
    %vm43 = vcmask 130048
    %v45 = vsel %vm43, %v38, 0
    %47 = vmatprep.subr.mxu0 0.0
    %48 = vmatpush1.msra.mxu0 0.0
    %49 = vmatprep.subr.mxu0 0.0
    %50 = vmatpush1.msra.mxu0 0.0
    %51 = vmatprep.subr.mxu0 0.0
    %52 = vmatpush1.msra.mxu0 0.0
    %53 = vmatprep.subr.mxu0 0.0
    %54 = vmatpush1.msra.mxu0 0.0
    %55 = vmatprep.subr.mxu0 0.0
    %56 = vmatpush1.msra.mxu0 0.0
    %57 = vmatprep.subr.mxu0 0.0
    %58 = vmatpush1.msra.mxu0 0.0
    %59 = vmatprep.subr.mxu0 0.0
    %60 = vmatpush1.msra.mxu0 0.0
    %61 = vmatprep.subr.mxu0 0.0
    %62 = vmatpush1.msra.mxu0 0.0
    %63 = vmatprep.subr.mxu0 0.0
    %64 = vmatpush1.msra.mxu0 0.0
    %65 = vmatprep.subr.mxu0 0.0
    %66 = vmatpush1.msra.mxu0 0.0
    %67 = vmatprep.subr.mxu0 0.0
    %68 = vmatpush1.msra.mxu0 0.0
    %69 = vmatprep.subr.mxu0 0.0
    %70 = vmatpush1.msra.mxu0 0.0
    %71 = vmatprep.subr.mxu0 0.0
    %72 = vmatpush1.msra.mxu0 0.0
    %73 = vmatprep.subr.mxu0 0.0
    %74 = vmatpush1.msra.mxu0 0.0
    %75 = vmatprep.subr.mxu0 %v42
    %76 = vmatpush1.msra.mxu0 %v41
    %77 = vmatprep.subr.mxu0 %v40
    %78 = vmatpush1.msra.mxu0 %v39
    %79 = vmatprep.subr.mxu0 0.0
    %80 = vmatpush2.msra.mxu0 0.0
    %81 = vmatprep.subr.mxu0 0.0
    %82 = vmatpush2.msra.mxu0 0.0
    %83 = vmatprep.subr.mxu0 0.0
    %84 = vmatpush2.msra.mxu0 0.0
    %85 = vmatprep.subr.mxu0 0.0
    %86 = vmatpush2.msra.mxu0 0.0
    %87 = vmatprep.subr.mxu0 0.0
    %88 = vmatpush2.msra.mxu0 0.0
    %89 = vmatprep.subr.mxu0 0.0
    %90 = vmatpush2.msra.mxu0 0.0
    %91 = vmatprep.subr.mxu0 0.0
    %92 = vmatpush2.msra.mxu0 0.0
    %93 = vmatprep.subr.mxu0 0.0
    %94 = vmatpush2.msra.mxu0 0.0
    %95 = vmatprep.subr.mxu0 0.0
    %96 = vmatpush2.msra.mxu0 0.0
    %97 = vmatprep.subr.mxu0 0.0
    %98 = vmatpush2.msra.mxu0 0.0
    %99 = vmatprep.subr.mxu0 0.0
    %100 = vmatpush2.msra.mxu0 0.0
    %101 = vmatprep.subr.mxu0 0.0
    %102 = vmatpush2.msra.mxu0 0.0
    %103 = vmatprep.subr.mxu0 0.0
    %104 = vmatpush2.msra.mxu0 0.0
    %105 = vmatprep.subr.mxu0 0.0
    %106 = vmatpush2.msra.mxu0 0.0
    %107 = vmatprep.subr.mxu0 0.0
    %108 = vmatpush2.msra.mxu0 0.0
    %109 = vmatprep.subr.mxu0 0.0
    %110 = vmatpush2.msra.mxu0 0.0
    %111 = vmatprep.mubr.f32.mxu0 0.0
    %112 = vmatmul.mubr.f32.gmra.mxu0 %v45
    %v113 = vpop.f32.mrf.mxu0
    %v114 = vadd.f32 0.0, %v113
    %v115 = vpop.f32.mrf.mxu0
    %v116 = vadd.f32 0.0, %v115
    %117 = vdwg.mxu0
    %v120 = vcombine.low %v114, %v116
    %122 = vst [vmem:[#allocation7] sm:$0xff] %v120
    // Predicated region
    $region18: #{tpu_custom_call.1} parent=1 // pred_check
      _
    $region19: #{tpu_custom_call.1} parent=1 // pred_check_branch
      %124 = sbr.rel (0) target = $region21
    $region20: #{tpu_custom_call.1} parent=1 // pred_region
      %s126 = ssub.s32 128, 128
      %127 = vsyncadd [#allocation4], %s126
      %s129 = sshll.u32 [#allocation7], 4
      %s130 = int_to_ptr.vmem [resolvable:$true] %s129
      %132 = dma.vmem_to_hbm [thread:$0]  %s130, 128, %s2, [#allocation4]
    $region21: #{tpu_custom_call.1} parent=1 // pred_fallthru
      _
    // Predicated region
    $region22: #{tpu_custom_call.1} parent=1 // pred_check
      _
    $region23: #{tpu_custom_call.1} parent=1 // pred_check_branch
      %134 = sbr.rel (0) target = $region25
    $region24: #{tpu_custom_call.1} parent=1 // pred_region
      %135 = dma.done [#allocation4], 128
    $region25: #{tpu_custom_call.1} parent=1 // pred_fallthru
      _
    %136 = vsyncpa [#allocation3], 1
    %137 = vsyncpa [#allocation6], 1
    %138 = vsyncpa [#allocation4], 1

</llo_original>
